<compile_context>
chip_gen: v7x
topology: tpu7x:2x2x1
jax: 0.10.0
libtpu: 0.0.40
codegen_flags: <defaults>
</compile_context>

<pallas_src>
import numpy as np

import jax
import jax.numpy as jnp
from jax.experimental import pallas as pl
from jax.experimental.pallas import tpu as pltpu


# ----------------------------- kernel ---------------------------------------


def _argmax_kernel(x_ref, idx_ref):
    """idx[b, t] = first-occurrence argmax over the vocab (lane) axis."""
    x = x_ref[...]                                        # (B_TILE, T_TILE, V)
    v = x.shape[-1]
    m = jnp.max(x, axis=-1, keepdims=True)                # (B_TILE, T_TILE, 1)
    hits = x == m
    if jnp.issubdtype(x.dtype, jnp.floating):
        # torch.argmax parity: a row containing NaN returns the first NaN
        # position (max(row) is NaN so `x == m` is all-False there).
        hits = hits | jnp.isnan(x)
    # Small (1, 1, V) lane iota, broadcast inside the select (no full-size
    # int32 iota tile).  First occurrence on ties = min lane index among hits.
    lane_ids = jax.lax.broadcasted_iota(jnp.int32, (1, 1, v), 2)
    idx = jnp.min(jnp.where(hits, lane_ids, jnp.int32(v)), axis=-1)
    idx_ref[...] = idx.astype(jnp.int32)


# ----------------------------- tiling ---------------------------------------


def _round_up(x, m):
    return (x + m - 1) // m * m


def _tpu_vmem_bytes():
    """Physical VMEM per core; conservative 64 MiB fallback (v7x per-TC)."""
    try:
        vmem = int(pltpu.get_tpu_info().vmem_capacity_bytes)
        if vmem >= 16 * 1024 * 1024:
            return vmem
    except Exception:
        pass
    return 64 * 1024 * 1024


def _pick_tiles(B, T, V, itemsize, vmem_bytes):
    """Pick (b_tile, t_tile) from the *padded* VMEM footprint.

    Constraints: output block (b_tile, t_tile) needs b_tile == B or b_tile % 8
    == 0, and t_tile == T or t_tile % 128 == 0.  V (< 128 for characters) is
    lane-padded to 128 in VMEM, so the real footprint of one input block is
    b_tile * round_up(t_tile, 8) * round_up(V, 128) * itemsize, double-buffered
    by the pipeline.
    """
    v_pad = _round_up(V, 128)
    b_tile = B if B <= 8 else 8

    # ~40% of physical VMEM for the double-buffered input blocks (leaves room
    # for the double-buffered output block and compiler scratch).
    budget = (vmem_bytes * 2) // 5
    t_max = budget // (2 * b_tile * v_pad * itemsize)
    t_max = max(128, (t_max // 128) * 128)

    if T <= t_max:
        t_tile = T                       # full-T block: no divisibility needed
    else:
        t_tile = t_max                   # multiple of 128 -> lane-dense stores

    # v7x has 2 TensorCores sharing the "parallel" grid axes: make sure the
    # grid has >= 2 steps once the problem is big enough to matter.
    if pl.cdiv(B, b_tile) * pl.cdiv(T, t_tile) < 2 and T >= 256:
        t_tile = min(t_tile, max(128, _round_up((T + 1) // 2, 128)))

    return b_tile, t_tile


# ----------------------------- wrapper ---------------------------------------


def greedy_argmax_pallas(x):
    """x: (B, T, V) float array (f32 or bf16). Returns (B, T) int32 argmax over V."""
    B, T, V = x.shape
    itemsize = jnp.dtype(x.dtype).itemsize
    vmem_bytes = _tpu_vmem_bytes()
    b_tile, t_tile = _pick_tiles(B, T, V, itemsize, vmem_bytes)
    grid = (pl.cdiv(B, b_tile), pl.cdiv(T, t_tile))

    # Scoped-VMEM limit sized from the actual (lane/sublane padded) blocks,
    # double-buffered, plus headroom — never copies a 128 MiB assumption onto
    # the 64 MiB v7x.
    v_pad = _round_up(V, 128)
    in_block_padded = b_tile * _round_up(t_tile, 8) * v_pad * itemsize
    out_block_padded = _round_up(b_tile, 8) * _round_up(t_tile, 128) * 4
    needed = 2 * (in_block_padded + out_block_padded) + (4 << 20)
    vmem_limit = int(min(max(needed, 32 << 20), vmem_bytes))

    cost = pl.CostEstimate(
        flops=2 * B * T * V,                               # max + compare/select
        transcendentals=0,
        bytes_accessed=B * T * V * itemsize + B * T * 4,   # logits in + idx out
    )

    return pl.pallas_call(
        _argmax_kernel,
        out_shape=jax.ShapeDtypeStruct((B, T), jnp.int32),
        grid=grid,
        in_specs=[pl.BlockSpec((b_tile, t_tile, V), lambda i, j: (i, j, 0))],
        out_specs=pl.BlockSpec((b_tile, t_tile), lambda i, j: (i, j)),
        compiler_params=pltpu.CompilerParams(
            dimension_semantics=("parallel", "parallel"),
            vmem_limit_bytes=vmem_limit,
        ),
        cost_estimate=cost,
    )(x)


def greedy_character_decode(x):
    """Full equivalent of GreedyCharacterDecoder.forward(x) for x of shape (B, T, V).

    argmax over V runs in the Pallas kernel; the dedup mask + ragged
    compaction (torch.unique_consecutive(..., dim=-1).tolist()) run as
    vectorized numpy on the tiny (B, T) int32 result.
    """
    idx = np.asarray(jax.device_get(greedy_argmax_pallas(x)))   # (B, T) int32
    # torch.unique_consecutive(indices, dim=-1): drop time column t iff it
    # equals column t-1 across the whole batch.
    changed = (idx[:, 1:] != idx[:, :-1]).any(axis=0)
    keep = np.concatenate(([True], changed))
    # TODO(synk): ragged variable-length output (.tolist()) has no on-device
    # equivalent; the compaction stays host-side by construction.
    return idx[:, keep].tolist()


# ----------------------------- self-test --------------------------------------


if __name__ == "__main__":
    key = jax.random.PRNGKey(0)

    # Small shape consistent with the module: batch=2, seq=8, vocab=32.
    B, T, V = 2, 8, 32
    x = jax.random.normal(key, (B, T, V), dtype=jnp.float32)

    idx = greedy_argmax_pallas(x)
    jax.block_until_ready(idx)

    decoded = greedy_character_decode(x)

    # Reference (numpy) with identical semantics to the PyTorch module.
    ref_idx = np.argmax(np.asarray(jax.device_get(x)), axis=-1)
    ref_cols = [0] + [
        t for t in range(1, T) if not (ref_idx[:, t] == ref_idx[:, t - 1]).all()
    ]
    ref_decoded = [[int(ref_idx[b, t]) for t in ref_cols] for b in range(B)]
    assert decoded == ref_decoded, (decoded, ref_decoded)

    # Larger, tiled + pipelined path (>= 2 grid steps, bf16 input halves the
    # HBM bytes of the bandwidth-bound pass).  Note: quantizing logits to
    # bf16 can flip near-ties vs f32 argmax; acceptable for greedy decoding.
    B2, T2, V2 = 4, 1024, 32
    x2 = jax.random.normal(jax.random.PRNGKey(1), (B2, T2, V2), dtype=jnp.bfloat16)
    idx2 = np.asarray(jax.device_get(greedy_argmax_pallas(x2)))
    ref_idx2 = np.argmax(np.asarray(jax.device_get(x2)).astype(np.float32), axis=-1)
    assert (idx2 == ref_idx2).all()

    print("KERNEL_OK")
</pallas_src>

<mosaic_0001>
module attributes {stable_mosaic.version = 11 : i64} {
  func.func @_argmax_kernel(%arg0: i32, %arg1: i32, %arg2: memref<2x8x32xf32, #tpu.memory_space<vmem>>, %arg3: memref<2x8xi32, #tpu.memory_space<vmem>>) attributes {dimension_semantics = [#tpu.dimension_semantics<parallel>, #tpu.dimension_semantics<parallel>], iteration_bounds = array<i64: 1, 1>, scalar_prefetch = 0 : i64, scratch_operands = 0 : i64, tpu.core_type = #tpu.core_type<tc>, window_params = [{transform_indices = @transform_0, window_bounds = array<i64: 2, 8, 32>}, {transform_indices = @transform_1, window_bounds = array<i64: 2, 8>}]} {
    %c0 = arith.constant 0 : index
    %c0_0 = arith.constant 0 : index
    %c0_1 = arith.constant 0 : index
    %0 = vector.load %arg2[%c0, %c0_0, %c0_1] : memref<2x8x32xf32, #tpu.memory_space<vmem>>, vector<2x8x32xf32>
    %cst = arith.constant dense<0xFF800000> : vector<2x8xf32>
    %1 = vector.multi_reduction <maximumf>, %0, %cst [2] : vector<2x8x32xf32> to vector<2x8xf32>
    %2 = vector.shape_cast %1 : vector<2x8xf32> to vector<2x8x1xf32>
    %3 = vector.broadcast %2 : vector<2x8x1xf32> to vector<2x8x32xf32>
    %4 = arith.cmpf oeq, %0, %3 : vector<2x8x32xf32>
    %5 = arith.cmpf one, %0, %0 : vector<2x8x32xf32>
    %6 = arith.ori %4, %5 : vector<2x8x32xi1>
    %7 = tpu.iota {dimensions = array<i32: 2>} : vector<1x1x32xi32>
    %c32_i32 = arith.constant 32 : i32
    %8 = vector.shape_cast %7 : vector<1x1x32xi32> to vector<1x1x32xi32>
    %9 = vector.broadcast %8 : vector<1x1x32xi32> to vector<2x8x32xi32>
    %10 = vector.broadcast %c32_i32 : i32 to vector<2x8x32xi32>
    %11 = arith.select %6, %9, %10 : vector<2x8x32xi1>, vector<2x8x32xi32>
    %cst_2 = arith.constant dense<2147483647> : vector<2x8xi32>
    %12 = vector.multi_reduction <minsi>, %11, %cst_2 [2] : vector<2x8x32xi32> to vector<2x8xi32>
    %c0_3 = arith.constant 0 : index
    %c0_4 = arith.constant 0 : index
    %13 = vector.load %arg3[%c0_3, %c0_4] : memref<2x8xi32, #tpu.memory_space<vmem>>, vector<2x8xi32>
    tpu.vector_store %arg3[%c0_3, %c0_4], %12 {strides = array<i32>} : memref<2x8xi32, #tpu.memory_space<vmem>>, vector<2x8xi32>,
    return
  }
  func.func @transform_0(%arg0: i32, %arg1: i32) -> (i32, i32, i32) {
    %c0_i32 = arith.constant 0 : i32
    %c0_i32_0 = arith.constant 0 : i32
    return %arg0, %arg1, %c0_i32 : i32, i32, i32
  }
  func.func @transform_1(%arg0: i32, %arg1: i32) -> (i32, i32) {
    %c0_i32 = arith.constant 0 : i32
    return %arg0, %arg1 : i32, i32
  }
}

</mosaic_0001>

<llo_original>
// kernel: tpu_custom_call.1
$region0: #{tpu_custom_call.1}
  #allocation0 [shape = 'u32[]', space=smem, size = 0x4, offset = 0x4, fixed_abs, tag = 'smem constant byte address 0x4 - core index']
  #allocation1 [shape = 'u32[144,128]{1,0:T(1,128)}', space=vmem, size = 0x12000, scoped, tag = 'internal scratch']
  %s0 = inlined_call_operand.hbm [shape: f32[2,8,32], index: 0, kind: input, shape index: {}]
  %s1 = inlined_call_operand.hbm [shape: s32[2,8], index: 1, kind: output, shape index: {}]
  %s2 = sld [smem:[#allocation0]]
  $region18: #{tpu_custom_call.1} parent=0
    _
  %s4 = ssub.s32 1, %s2
  %s5 = scalar_select 0, %s4, %s2
  $region1: #{tpu_custom_call.1} parent=0
    #allocation2 [shape = 'u8[8192]{0}', space=vmem, size = 0x2000, scoped, tag = 'input window, operand 0, single buffered']
    #allocation3 [shape = 's32[1]{0}', space=sflag, size = 0x4, scoped, tag = 'scoped memory for tpu_custom_call.1']
    #allocation4 [shape = 's32[1]{0}', space=sflag, size = 0x4, scoped, tag = 'scoped memory for tpu_custom_call.1']
    #allocation5 [shape = 'u8[1024]{0}', space=vmem, size = 0x400, scoped, tag = 'output window, operand 0, single buffered']
    %6 = vsyncpa [#allocation3], 0
    %7 = vsyncpa [#allocation4], 0
    // Predicated region
    $region2: #{tpu_custom_call.1} parent=1 // pred_check
      _
    $region3: #{tpu_custom_call.1} parent=1 // pred_check_branch
      %9 = sbr.rel (0) target = $region5
    $region4: #{tpu_custom_call.1} parent=1 // pred_region
      %s11 = ssub.s32 256, 256
      %12 = vsyncadd [#allocation3], %s11
      %s13 = sshll.u32 [#allocation2], 4
      %s14 = int_to_ptr.vmem [resolvable:$true] %s13
      %19 = dma.hbm_to_vmem [thread:$0]  %s0, 256, %s14, [#allocation3], 128, 128, 8
    $region5: #{tpu_custom_call.1} parent=1 // pred_fallthru
      _
    // Predicated region
    $region6: #{tpu_custom_call.1} parent=1 // pred_check
      _
    $region7: #{tpu_custom_call.1} parent=1 // pred_check_branch
      %21 = sbr.rel (0) target = $region9
    $region8: #{tpu_custom_call.1} parent=1 // pred_region
      %22 = dma.done [#allocation3], 256
    $region9: #{tpu_custom_call.1} parent=1 // pred_fallthru
      _
    %v23 = vld [vmem:[#allocation2] sm:$0xff]
    %v24 = vld [vmem:[#allocation2 + $0x8] sm:$0xff]
    %vm25 = vcmask 261120
    %v26 = vsel %vm25, %v23, -inf
    %27 = vmax.xlane.f32.xlu0 %v26
    %v28 = vpop.xlane.xlu0 %27
    %v29 = vsel %vm25, %v24, -inf
    %30 = vmax.xlane.f32.xlu0 %v29
    %v31 = vpop.xlane.xlu0 %30
    %vm32 = vcmp.eq.f32.partialorder %v23, %v28
    %vm33 = vcmp.eq.f32.partialorder %v24, %v31
    %vm34 = vcmp.ne.f32.partialorder %v23, %v23
    %vm35 = vcmp.ne.f32.partialorder %v24, %v24
    %vm36 = vmor %vm32, %vm34
    %vm37 = vmor %vm33, %vm35
    %v38 = vlaneseq
    %v39 = vand.u32 %v38, 127
    %v40 = vsel %vm36, %v39, 32
    %v41 = vsel %vm37, %v39, 32
    %v42 = vsel %vm25, %v40, 2147483647
    %v43 = vand.u32 %v42, 65535
    %v44 = vshra.s32 %v42, 16
    %v45 = vcvt.s32.f32 %v43
    %v46 = vcvt.s32.f32 %v44
    %47 = vmin.xlane.f32.xlu0 %v46
    %v48 = vpop.xlane.xlu0 %47
    %vm49 = vcmp.eq.f32.partialorder %v46, %v48
    %v50 = vsel %vm49, %v45, inf
    %51 = vmin.xlane.f32.xlu0 %v50
    %v52 = vpop.xlane.xlu0 %51
    %v53 = vcvt.f32.s32 %v52
    %v54 = vcvt.f32.s32 %v48
    %v55 = vshll.u32 %v54, 16
    %v56 = vadd.s32 %v55, %v53
    %v57 = vsel %vm25, %v41, 2147483647
    %v58 = vand.u32 %v57, 65535
    %v59 = vshra.s32 %v57, 16
    %v60 = vcvt.s32.f32 %v58
    %v61 = vcvt.s32.f32 %v59
    %62 = vmin.xlane.f32.xlu0 %v61
    %v63 = vpop.xlane.xlu0 %62
    %vm64 = vcmp.eq.f32.partialorder %v61, %v63
    %v65 = vsel %vm64, %v60, inf
    %66 = vmin.xlane.f32.xlu0 %v65
    %v67 = vpop.xlane.xlu0 %66
    %v68 = vcvt.f32.s32 %v67
    %v69 = vcvt.f32.s32 %v63
    %v70 = vshll.u32 %v69, 16
    %v71 = vadd.s32 %v70, %v68
    %v72 = vlaneseq
    %v73 = vshrl.u32 %v72, 7
    %v74 = vsub.s32 %v39, %v73
    %v75 = vrot.slane %v56, %v74
    %v76 = vlaneseq
    %v77 = vshrl.u32 %v76, 7
    %v78 = vsub.s32 %v39, %v77
    %v79 = vrot.slane %v71, %v78
    %vm80 = vcmask 1041409
    %v81 = vsel %vm80, %v79, %v75
    %vm82 = vcmask 58368
    %83 = vst.msk [vmem:[#allocation5] sm:$0x3] %vm82, %v81
    // Predicated region
    $region10: #{tpu_custom_call.1} parent=1 // pred_check
      _
    $region11: #{tpu_custom_call.1} parent=1 // pred_check_branch
      %85 = sbr.rel (0) target = $region13
    $region12: #{tpu_custom_call.1} parent=1 // pred_region
      %s87 = ssub.s32 32, 32
      %88 = vsyncadd [#allocation4], %s87
      %s90 = sshll.u32 [#allocation5], 4
      %s91 = int_to_ptr.vmem [resolvable:$true] %s90
      %93 = dma.vmem_to_hbm [thread:$0]  %s91, 32, %s1, [#allocation4]
    $region13: #{tpu_custom_call.1} parent=1 // pred_fallthru
      _
    // Predicated region
    $region14: #{tpu_custom_call.1} parent=1 // pred_check
      _
    $region15: #{tpu_custom_call.1} parent=1 // pred_check_branch
      %95 = sbr.rel (0) target = $region17
    $region16: #{tpu_custom_call.1} parent=1 // pred_region
      %96 = dma.done [#allocation4], 32
    $region17: #{tpu_custom_call.1} parent=1 // pred_fallthru
      _
    %97 = vsyncpa [#allocation3], 1
    %98 = vsyncpa [#allocation4], 1

</llo_original>
